<compile_context>
chip_gen: v6e
topology: v6e:2x2x1
jax: 0.10.0
libtpu: 0.0.40
codegen_flags: <defaults>
</compile_context>

<pallas_src>
import jax
import jax.numpy as jnp
from jax.experimental import pallas as pl
from jax.experimental.pallas import tpu as pltpu

EPS = 1e-5


# --------------------------------------------------------------------------- #
# Kernel
# --------------------------------------------------------------------------- #
def biasfree_layernorm_kernel(x_ref, w_ref, o_ref):
    # x_ref block: (rt, C); w_ref: (1, C) full f32 weight, resident every step.
    x = x_ref[...].astype(jnp.float32)                 # f32 statistics
    mean = jnp.mean(x, axis=-1, keepdims=True)         # (rt, 1) lane reduce (XLU)
    d = x - mean
    var = jnp.mean(d * d, axis=-1, keepdims=True)      # biased (unbiased=False)
    inv = jax.lax.rsqrt(var + EPS)                     # EUP slot (free vs DMA stream)
    o_ref[...] = (x * inv * w_ref[...]).astype(o_ref.dtype)


# --------------------------------------------------------------------------- #
# Tiling policy
# --------------------------------------------------------------------------- #
def _tpu_params():
    """Per-generation slab target, minimum grid steps (megacore), VMEM budget."""
    kind = ""
    try:
        kind = jax.devices()[0].device_kind.lower()
    except Exception:
        pass
    if "v7" in kind or "7x" in kind:
        # 64 MiB VMEM/TC, 3.2 TB/s HBM, 2 TensorCores -> moderate slabs, even split.
        return dict(target_tile_bytes=5 << 20, min_steps=8, vmem_cap=48 << 20)
    if "v6" in kind:
        # 1.4 TB/s HBM, 128 MiB VMEM -> bigger slabs are nearly free.
        return dict(target_tile_bytes=6 << 20, min_steps=1, vmem_cap=100 << 20)
    if "v5p" in kind or "v4" in kind:
        # megacore (2 TC) parts
        return dict(target_tile_bytes=4 << 20, min_steps=4, vmem_cap=100 << 20)
    if "v5" in kind:
        # v5e: steps are already ~5 us at 2-3 MiB; don't burn VMEM for nothing.
        return dict(target_tile_bytes=3 << 20, min_steps=1, vmem_cap=100 << 20)
    return dict(target_tile_bytes=4 << 20, min_steps=2, vmem_cap=48 << 20)


def _pick_row_tile(R, bytes_per_row, sublane, target_bytes, min_steps):
    """Rows per grid step: multiple of `sublane`, ~target_bytes per slab.
    No divisor-of-R requirement (cdiv grid, partial tail block is masked).
    On multi-TensorCore parts, ensure >= min_steps steps, preferring even."""
    rt = max(sublane, (target_bytes // max(bytes_per_row, 1)) // sublane * sublane)
    rt = min(rt, max(sublane, (R // sublane) * sublane))   # don't exceed row count
    if min_steps > 1 and R >= min_steps * sublane:
        cap = max(sublane, ((R // min_steps) // sublane) * sublane)
        rt = min(rt, cap)
        steps = -(-R // rt)
        if steps % 2:                                       # prefer even split
            for cand in range(rt, sublane - 1, -sublane):
                if (-(-R // cand)) % 2 == 0:
                    rt = cand
                    break
    return int(rt)


# --------------------------------------------------------------------------- #
# Wrapper
# --------------------------------------------------------------------------- #
def biasfree_layernorm(x, weight, *, donate_input=False, target_tile_bytes=None):
    """x: (..., C).  weight: (C,).  Set donate_input=True only if x's buffer is
    truly donated (jit donate_argnums / x dead after the call)."""
    orig_shape = x.shape
    C = orig_shape[-1]
    assert weight.shape == (C,)
    R = 1
    for s in orig_shape[:-1]:
        R *= int(s)

    params = _tpu_params()
    if target_tile_bytes is None:
        target_tile_bytes = params["target_tile_bytes"]

    x2 = x.reshape(R, C)                                # free reshape, no transpose
    w2 = weight.reshape(1, C).astype(jnp.float32)       # weight stays f32

    itemsize = x2.dtype.itemsize
    sublane = max(8, 32 // max(itemsize, 1))            # 8 f32 / 16 bf16 / 32 int8
    c_pad = ((C + 127) // 128) * 128                    # lane padding in VMEM
    bytes_per_row = c_pad * itemsize

    rt = _pick_row_tile(R, bytes_per_row, sublane, target_tile_bytes,
                        params["min_steps"])
    grid = (pl.cdiv(R, rt),)                            # partial tail block allowed

    # 2 input bufs + 2 output bufs (double buffering) + weight + slack.
    block_bytes = rt * bytes_per_row
    w_bytes = 8 * c_pad * 4
    vmem_needed = 4 * block_bytes + 2 * w_bytes + (4 << 20)
    vmem_limit = int(min(max(vmem_needed, 16 << 20), params["vmem_cap"]))

    out = pl.pallas_call(
        biasfree_layernorm_kernel,
        out_shape=jax.ShapeDtypeStruct((R, C), x.dtype),
        grid_spec=pltpu.PrefetchScalarGridSpec(
            num_scalar_prefetch=0,
            grid=grid,
            in_specs=[
                pl.BlockSpec((rt, C), lambda i: (i, 0)),   # x row-slab
                pl.BlockSpec((1, C), lambda i: (0, 0)),    # full weight, every step
            ],
            out_specs=pl.BlockSpec((rt, C), lambda i: (i, 0)),
        ),
        input_output_aliases=({0: 0} if donate_input else {}),
        compiler_params=pltpu.CompilerParams(
            dimension_semantics=("parallel",),
            vmem_limit_bytes=vmem_limit,
        ),
    )(x2, w2)

    return out.reshape(orig_shape)


def biasfree_layernorm_ref(x, weight):
    """Pure-JAX reference mirroring the PyTorch module."""
    sigma = jnp.var(x.astype(jnp.float32), axis=-1, keepdims=True)  # unbiased=False
    y = x.astype(jnp.float32) / jnp.sqrt(sigma + EPS) * weight.astype(jnp.float32)
    return y.astype(x.dtype)


# --------------------------------------------------------------------------- #
# Demo / self-test
# --------------------------------------------------------------------------- #
if __name__ == "__main__":
    key = jax.random.PRNGKey(0)
    kx, kw = jax.random.split(key)

    # Case 1: Restormer-like (B, tokens, C) with C=48 (not a multiple of 128)
    # and a row count that is NOT a multiple of 8 -> exercises lane padding and
    # the partial tail block of the cdiv grid.
    B, N, C = 2, 65, 48
    x = jax.random.normal(kx, (B, N, C), dtype=jnp.float32)
    weight = 1.0 + 0.1 * jax.random.normal(kw, (C,), dtype=jnp.float32)
    y = jax.block_until_ready(biasfree_layernorm(x, weight))
    assert y.shape == x.shape
    assert jnp.allclose(y, biasfree_layernorm_ref(x, weight), atol=1e-5, rtol=1e-5), \
        "mismatch vs reference (case 1)"

    # Case 2: lane-dense C=128, larger row count -> multi-step grid on 2-TC parts.
    B2, N2, C2 = 2, 256, 128
    x2 = jax.random.normal(kx, (B2, N2, C2), dtype=jnp.float32)
    w2 = 1.0 + 0.1 * jax.random.normal(kw, (C2,), dtype=jnp.float32)
    y2 = jax.block_until_ready(biasfree_layernorm(x2, w2))
    assert jnp.allclose(y2, biasfree_layernorm_ref(x2, w2), atol=1e-5, rtol=1e-5), \
        "mismatch vs reference (case 2)"

    print("KERNEL_OK")
</pallas_src>

<mosaic_0001>
module attributes {stable_mosaic.version = 11 : i64} {
  func.func @biasfree_layernorm_kernel(%arg0: i32, %arg1: memref<40x48xf32, #tpu.memory_space<vmem>>, %arg2: memref<1x48xf32, #tpu.memory_space<vmem>>, %arg3: memref<40x48xf32, #tpu.memory_space<vmem>>) attributes {dimension_semantics = [#tpu.dimension_semantics<parallel>], iteration_bounds = array<i64: 4>, scalar_prefetch = 0 : i64, scratch_operands = 0 : i64, tpu.core_type = #tpu.core_type<tc>, window_params = [{transform_indices = @transform_0, window_bounds = array<i64: 40, 48>}, {pipeline_mode = #tpu.pipeline_mode<synchronous>, transform_indices = @transform_1, window_bounds = array<i64: 1, 48>}, {transform_indices = @transform_2, window_bounds = array<i64: 40, 48>}]} {
    %c0 = arith.constant 0 : index
    %c0_0 = arith.constant 0 : index
    %0 = vector.load %arg1[%c0, %c0_0] : memref<40x48xf32, #tpu.memory_space<vmem>>, vector<40x48xf32>
    %cst = arith.constant dense<0.000000e+00> : vector<40xf32>
    %1 = vector.multi_reduction <add>, %0, %cst [1] : vector<40x48xf32> to vector<40xf32>
    %2 = vector.shape_cast %1 : vector<40xf32> to vector<40x1xf32>
    %cst_1 = arith.constant 4.800000e+01 : f32
    %3 = vector.broadcast %cst_1 : f32 to vector<40x1xf32>
    %4 = arith.divf %2, %3 : vector<40x1xf32>
    %5 = vector.broadcast %4 : vector<40x1xf32> to vector<40x48xf32>
    %6 = arith.subf %0, %5 : vector<40x48xf32>
    %7 = arith.mulf %6, %6 : vector<40x48xf32>
    %cst_2 = arith.constant dense<0.000000e+00> : vector<40xf32>
    %8 = vector.multi_reduction <add>, %7, %cst_2 [1] : vector<40x48xf32> to vector<40xf32>
    %9 = vector.shape_cast %8 : vector<40xf32> to vector<40x1xf32>
    %cst_3 = arith.constant 4.800000e+01 : f32
    %10 = vector.broadcast %cst_3 : f32 to vector<40x1xf32>
    %11 = arith.divf %9, %10 : vector<40x1xf32>
    %cst_4 = arith.constant 9.99999974E-6 : f32
    %12 = vector.broadcast %cst_4 : f32 to vector<40x1xf32>
    %13 = arith.addf %11, %12 : vector<40x1xf32>
    %14 = math.rsqrt %13 : vector<40x1xf32>
    %15 = vector.broadcast %14 : vector<40x1xf32> to vector<40x48xf32>
    %16 = arith.mulf %0, %15 : vector<40x48xf32>
    %c0_5 = arith.constant 0 : index
    %c0_6 = arith.constant 0 : index
    %17 = vector.load %arg2[%c0_5, %c0_6] : memref<1x48xf32, #tpu.memory_space<vmem>>, vector<1x48xf32>
    %18 = vector.broadcast %17 : vector<1x48xf32> to vector<40x48xf32>
    %19 = arith.mulf %16, %18 : vector<40x48xf32>
    %c0_7 = arith.constant 0 : index
    %c0_8 = arith.constant 0 : index
    %20 = vector.load %arg3[%c0_7, %c0_8] : memref<40x48xf32, #tpu.memory_space<vmem>>, vector<40x48xf32>
    tpu.vector_store %arg3[%c0_7, %c0_8], %19 {strides = array<i32>} : memref<40x48xf32, #tpu.memory_space<vmem>>, vector<40x48xf32>,
    return
  }
  func.func @transform_0(%arg0: i32) -> (i32, i32) {
    %c0_i32 = arith.constant 0 : i32
    %c0_i32_0 = arith.constant 0 : i32
    return %arg0, %c0_i32 : i32, i32
  }
  func.func @transform_1(%arg0: i32) -> (i32, i32) {
    %c0_i32 = arith.constant 0 : i32
    %c0_i32_0 = arith.constant 0 : i32
    %c0_i32_1 = arith.constant 0 : i32
    return %c0_i32, %c0_i32_0 : i32, i32
  }
  func.func @transform_2(%arg0: i32) -> (i32, i32) {
    %c0_i32 = arith.constant 0 : i32
    %c0_i32_0 = arith.constant 0 : i32
    return %arg0, %c0_i32 : i32, i32
  }
}

</mosaic_0001>

<llo_original>
// kernel: tpu_custom_call.1
$region0: #{tpu_custom_call.1}
  #allocation0 [shape = 'u32[]', space=smem, size = 0x4, offset = 0x4, fixed_abs, tag = 'smem constant byte address 0x4 - core index']
  #allocation1 [shape = 'u32[144,128]{1,0:T(1,128)}', space=vmem, size = 0x12000, scoped, tag = 'internal scratch']
  %s0 = inlined_call_operand.vmem [shape: f32[130,48], index: 0, kind: input, shape index: {}]
  %s1 = inlined_call_operand.vmem [shape: f32[1,48], index: 1, kind: input, shape index: {}]
  %s2 = inlined_call_operand.vmem [shape: f32[130,48], index: 2, kind: output, shape index: {}]
  %s3 = sld [smem:[#allocation0]]
  $region89: #{tpu_custom_call.1} parent=0
    _
  %s5 = ssub.s32 1, %s3
  %s6 = scalar_select 0, %s5, %s3
  $region1: #{tpu_custom_call.1} parent=0
    #allocation2 [shape = 'u8[40960]{0}', space=vmem, size = 0xa000, scoped, tag = 'output window, operand 0']
    loop: start=0, step=1, limit=6
    $region2: #{tpu_custom_call.1} parent=1 // loop_pre_header
      _
    $region3: #{tpu_custom_call.1} parent=1 // loop_header
      %s8 = sphi 0, %s12
      %p9 = scmp.ge.s32.totalorder %s8, 6
      %s18 = sphi 0, %s20
      %s21 = sphi 0, %s18
      %s22 = sphi 0, %s21
      %s38 = sphi 0, %s22
      %s42 = sphi 0, %s42
      %s44 = sphi 0, %s42
      %s45 = sphi 0, %s44
      %s59 = sphi 0, %s45
      %s65 = sphi 0, %s67
      %s68 = sphi 0, %s65
      %s69 = sphi 0, %s68
      %s85 = sphi 0, %s69
    $region4: #{tpu_custom_call.1} parent=1 // loop_header_branch
      %11 = sbr.rel (%p9) target = $region8
    $region5: #{tpu_custom_call.1} parent=1 // loop_body
      %s13 = ssub.s32 %s8, 1
      %s14 = ssub.s32 %s8, 2
      %s15 = sadd.s32 %s8, 1
      %s16 = ssub.s32 %s8, %s15
      %p17 = scmp.eq.s32.totalorder %s16, 0
      %s19 = sadd.s32 %s18, 1
      %s20 = scalar_select %p17, %s18, %s19
      %p23 = pneg %p17
      %p24 = scmp.eq.s32.totalorder %s8, 3
      %p25 = por %p23, %p24
      %p26 = scmp.ne.s32.totalorder %s18, %s21
      %p27 = scmp.eq.s32.totalorder %s8, 0
      %p28 = por %p26, %p27
      %p29 = scmp.ne.s32.totalorder %s18, %s21
      %p30 = scmp.eq.s32.totalorder %s13, 3
      %p31 = por %p29, %p30
      %p32 = scmp.ne.s32.totalorder %s21, %s22
      %p33 = scmp.eq.s32.totalorder %s13, 0
      %p34 = por %p32, %p33
      %p35 = scmp.ne.s32.totalorder %s21, %s22
      %p36 = scmp.eq.s32.totalorder %s14, 3
      %p37 = por %p35, %p36
      %p39 = scmp.ne.s32.totalorder %s22, %s38
      %p40 = scmp.eq.s32.totalorder %s14, 0
      %p41 = por %p39, %p40
      %s43 = sadd.s32 %s42, 1
      %p46 = scmp.eq.s32.totalorder %s8, 3
      %p47 = scmp.ne.s32.totalorder %s42, %s44
      %p48 = scmp.eq.s32.totalorder %s8, 0
      %p49 = por %p47, %p48
      %p50 = scmp.ne.s32.totalorder %s42, %s44
      %p51 = scmp.eq.s32.totalorder %s13, 3
      %p52 = por %p50, %p51
      %p53 = scmp.ne.s32.totalorder %s44, %s45
      %p54 = scmp.eq.s32.totalorder %s13, 0
      %p55 = por %p53, %p54
      %p56 = scmp.ne.s32.totalorder %s44, %s45
      %p57 = scmp.eq.s32.totalorder %s14, 3
      %p58 = por %p56, %p57
      %p60 = scmp.ne.s32.totalorder %s45, %s59
      %p61 = scmp.eq.s32.totalorder %s14, 0
      %p62 = por %p60, %p61
      %s63 = ssub.s32 %s8, %s15
      %p64 = scmp.eq.s32.totalorder %s63, 0
      %s66 = sadd.s32 %s65, 1
      %s67 = scalar_select %p64, %s65, %s66
      %p70 = pneg %p64
      %p71 = scmp.eq.s32.totalorder %s8, 3
      %p72 = por %p70, %p71
      %p73 = scmp.ne.s32.totalorder %s65, %s68
      %p74 = scmp.eq.s32.totalorder %s8, 0
      %p75 = por %p73, %p74
      %p76 = scmp.ne.s32.totalorder %s65, %s68
      %p77 = scmp.eq.s32.totalorder %s13, 3
      %p78 = por %p76, %p77
      %p79 = scmp.ne.s32.totalorder %s68, %s69
      %p80 = scmp.eq.s32.totalorder %s13, 0
      %p81 = por %p79, %p80
      %p82 = scmp.ne.s32.totalorder %s68, %s69
      %p83 = scmp.eq.s32.totalorder %s14, 3
      %p84 = por %p82, %p83
      %p86 = scmp.ne.s32.totalorder %s69, %s85
      %p87 = scmp.eq.s32.totalorder %s14, 0
      %p88 = por %p86, %p87
      %p89 = scmp.le.s32.totalorder 1, %s8
      %p90 = scmp.lt.s32.totalorder %s8, 5
      %p91 = pnand %p89, %p90
      %p92 = pneg %p91
      // Predicated region
      $region9: #{tpu_custom_call.1} parent=5 // pred_check
        _
      $region10: #{tpu_custom_call.1} parent=5 // pred_check_branch
        %94 = sbr.rel (%p91) target = $region12
      $region11: #{tpu_custom_call.1} parent=5 // pred_region
        %s95 = ssub.s32 %s8, 1
        // Predicated region
        $region13: #{tpu_custom_call.1} parent=11 // pred_check
          %p96 = pneg %p55
        $region14: #{tpu_custom_call.1} parent=11 // pred_check_branch
          %98 = sbr.rel (%p96) target = $region16
        $region15: #{tpu_custom_call.1} parent=11 // pred_region
          _
        $region16: #{tpu_custom_call.1} parent=11 // pred_fallthru
          _
      $region12: #{tpu_custom_call.1} parent=5 // pred_fallthru
        _
      %p99 = scmp.lt.s32.totalorder %s8, 4
      // Predicated region
      $region17: #{tpu_custom_call.1} parent=5 // pred_check
        %p100 = pneg %p99
      $region18: #{tpu_custom_call.1} parent=5 // pred_check_branch
        %102 = sbr.rel (%p100) target = $region20
      $region19: #{tpu_custom_call.1} parent=5 // pred_region
        // Predicated region
        $region21: #{tpu_custom_call.1} parent=19 // pred_check
          %p103 = pneg %p28
        $region22: #{tpu_custom_call.1} parent=19 // pred_check_branch
          %105 = sbr.rel (%p103) target = $region24
        $region23: #{tpu_custom_call.1} parent=19 // pred_region
          %s106 = smul.u32 5, %s8
          %s107 = ssub.s32 17, %s106
          %p108 = scmp.lt.s32.totalorder %s107, 5
          %s109 = scalar_select %p108, %s107, 5
          %s110 = smul.u32 128, %s109
          %p111 = scmp.lt.s32.totalorder %s106, 16
          %s112 = scalar_select %p111, %s106, 16
          %s113 = smul.addr %s112, 8
          %s114 = scalar_lea.vmem %s0, %s113
          %s115 = smul.u32 5, %s8
          %s116 = ssub.s32 17, %s115
          %p117 = scmp.lt.s32.totalorder %s116, 5
          %s118 = scalar_select %p117, %s116, 5
          %s119 = smul.u32 128, %s118
        $region24: #{tpu_custom_call.1} parent=19 // pred_fallthru
          _
      $region20: #{tpu_custom_call.1} parent=5 // pred_fallthru
        _
      %p120 = scmp.le.s32.totalorder 1, %s8
      %p121 = scmp.lt.s32.totalorder %s8, 5
      %p122 = pnand %p120, %p121
      %p123 = pneg %p122
      // Predicated region
      $region25: #{tpu_custom_call.1} parent=5 // pred_check
        _
      $region26: #{tpu_custom_call.1} parent=5 // pred_check_branch
        %125 = sbr.rel (%p122) target = $region28
      $region27: #{tpu_custom_call.1} parent=5 // pred_region
        %s126 = ssub.s32 %s8, 1
        %s127 = smul.u32 5, %s13
        %s128 = ssub.s32 17, %s127
        %p129 = scmp.lt.s32.totalorder %s128, 5
        %s130 = scalar_select %p129, %s128, 5
        %s131 = smul.u32 128, %s130
        %p132 = scmp.lt.s32.totalorder %s127, 16
        %s133 = scalar_select %p132, %s127, 16
        %s134 = smul.addr %s133, 8
        %s135 = scalar_lea.vmem %s0, %s134
        %p136 = pneg %p34
        %p137 = pneg %p31
        %p138 = pneg %p55
        %p139 = pneg %p52
        %p140 = pneg %p81
        %p141 = pneg %p78
        %s142 = sand.u32 %s68, 1
        %s143 = sand.u32 %s68, 1
        %s144 = smul.addr %s143, 40
        %s145 = scalar_lea.vmem [#allocation2], %s144
        %s146 = smul.u32 5, %s13
        %s147 = ssub.s32 17, %s146
        %p148 = scmp.lt.s32.totalorder %s147, 5
        %s149 = scalar_select %p148, %s147, 5
        %s150 = smul.u32 128, %s149
        %p151 = scmp.lt.s32.totalorder %s146, 16
        %s152 = scalar_select %p151, %s146, 16
        %s153 = smul.addr %s152, 8
        %s154 = scalar_lea.vmem %s0, %s153
        %s155 = smul.u32 5, %s13
        %s156 = ssub.s32 17, %s155
        %p157 = scmp.lt.s32.totalorder %s156, 5
        %s158 = scalar_select %p157, %s156, 5
        %s159 = smul.u32 128, %s158
        %s160 = smul.u32 5, %s13
        %s161 = ssub.s32 17, %s160
        %p162 = scmp.lt.s32.totalorder %s161, 5
        %s163 = scalar_select %p162, %s161, 5
        %s164 = smul.u32 128, %s163
        %v165 = vld [vmem:[%s154] sm:$0xff]
        %v166 = vld [vmem:[%s154 + $0x8] sm:$0xff]
        %v167 = vld [vmem:[%s154 + $0x10] sm:$0xff]
        %v168 = vld [vmem:[%s154 + $0x18] sm:$0xff]
        %v169 = vld [vmem:[%s154 + $0x20] sm:$0xff]
        %vm170 = vcmask 392192
        %v171 = vsel %vm170, %v165, 0.0
        %172 = vadd.xlane.f32.xlu0 %v171
        %v173 = vpop.xlane.xlu0 %172
        %v174 = vsel %vm170, %v166, 0.0
        %175 = vadd.xlane.f32.xlu0 %v174
        %v176 = vpop.xlane.xlu0 %175
        %v177 = vsel %vm170, %v167, 0.0
        %178 = vadd.xlane.f32.xlu0 %v177
        %v179 = vpop.xlane.xlu0 %178
        %v180 = vsel %vm170, %v168, 0.0
        %181 = vadd.xlane.f32.xlu0 %v180
        %v182 = vpop.xlane.xlu0 %181
        %v183 = vsel %vm170, %v169, 0.0
        %184 = vadd.xlane.f32.xlu0 %v183
        %v185 = vpop.xlane.xlu0 %184
        %v186 = vrcp.pop 48.0
        %v187 = vmul.f32 %v173, %v186
        %v188 = vmul.f32 %v176, %v186
        %v189 = vmul.f32 %v179, %v186
        %v190 = vmul.f32 %v182, %v186
        %v191 = vmul.f32 %v185, %v186
        %v192 = vsub.f32 %v165, %v187
        %v193 = vsub.f32 %v166, %v188
        %v194 = vsub.f32 %v167, %v189
        %v195 = vsub.f32 %v168, %v190
        %v196 = vsub.f32 %v169, %v191
        %v197 = vmul.f32 %v192, %v192
        %v198 = vmul.f32 %v193, %v193
        %v199 = vmul.f32 %v194, %v194
        %v200 = vmul.f32 %v195, %v195
        %v201 = vmul.f32 %v196, %v196
        %v202 = vsel %vm170, %v197, 0.0
        %203 = vadd.xlane.f32.xlu0 %v202
        %v204 = vpop.xlane.xlu0 %203
        %v205 = vsel %vm170, %v198, 0.0
        %206 = vadd.xlane.f32.xlu0 %v205
        %v207 = vpop.xlane.xlu0 %206
        %v208 = vsel %vm170, %v199, 0.0
        %209 = vadd.xlane.f32.xlu0 %v208
        %v210 = vpop.xlane.xlu0 %209
        %v211 = vsel %vm170, %v200, 0.0
        %212 = vadd.xlane.f32.xlu0 %v211
        %v213 = vpop.xlane.xlu0 %212
        %v214 = vsel %vm170, %v201, 0.0
        %215 = vadd.xlane.f32.xlu0 %v214
        %v216 = vpop.xlane.xlu0 %215
        %v217 = vmul.f32 %v204, %v186
        %v218 = vmul.f32 %v207, %v186
        %v219 = vmul.f32 %v210, %v186
        %v220 = vmul.f32 %v213, %v186
        %v221 = vmul.f32 %v216, %v186
        %v222 = vadd.f32 %v217, 1e-05
        %v223 = vadd.f32 %v218, 1e-05
        %v224 = vadd.f32 %v219, 1e-05
        %v225 = vadd.f32 %v220, 1e-05
        %v226 = vadd.f32 %v221, 1e-05
        %v227 = vrsqrt.pop %v222
        %v228 = vrsqrt.pop %v223
        %v229 = vrsqrt.pop %v224
        %v230 = vrsqrt.pop %v225
        %v231 = vrsqrt.pop %v226
        %v232 = vmul.f32 %v165, %v227
        %v233 = vmul.f32 %v166, %v228
        %v234 = vmul.f32 %v167, %v229
        %v235 = vmul.f32 %v168, %v230
        %v236 = vmul.f32 %v169, %v231
        %v237 = vld [vmem:[%s1] sm:$0x1]
        %v239 = vlaneseq
        %v240 = vshrl.u32 %v239, 7
        %v241 = vsub.s32 0, %v240
        %v242 = vrot.slane %v237, %v241
        %v244 = vmul.f32 %v232, %v242
        %v245 = vmul.f32 %v233, %v242
        %v246 = vmul.f32 %v234, %v242
        %v247 = vmul.f32 %v235, %v242
        %v248 = vmul.f32 %v236, %v242
        %249 = vst.msk [vmem:[%s145] sm:$0xff] %vm170, %v244
        %250 = vst.msk [vmem:[%s145 + $0x8] sm:$0xff] %vm170, %v245
        %251 = vst.msk [vmem:[%s145 + $0x10] sm:$0xff] %vm170, %v246
        %252 = vst.msk [vmem:[%s145 + $0x18] sm:$0xff] %vm170, %v247
        %253 = vst.msk [vmem:[%s145 + $0x20] sm:$0xff] %vm170, %v248
        %s254 = sand.u32 %s68, 1
        %s255 = sand.u32 %s68, 1
        %s256 = smul.addr %s255, 40
        %s257 = scalar_lea.vmem [#allocation2], %s256
        // Predicated region
        $region29: #{tpu_custom_call.1} parent=27 // pred_check
          %p258 = pneg %p78
        $region30: #{tpu_custom_call.1} parent=27 // pred_check_branch
          %260 = sbr.rel (%p258) target = $region32
        $region31: #{tpu_custom_call.1} parent=27 // pred_region
          %s261 = smul.u32 5, %s13
          %s262 = ssub.s32 17, %s261
          %p263 = scmp.lt.s32.totalorder %s262, 5
          %s264 = scalar_select %p263, %s262, 5
          %s265 = smul.u32 128, %s264
          %p266 = scmp.ne.s32.totalorder 0, %s265
          %s267 = smul.addr %s261, 8
          %s268 = scalar_lea.vmem %s2, %s267
          // Predicated region
          $region33: #{tpu_custom_call.1} parent=31 // pred_check
            %p269 = pneg %p266
          $region34: #{tpu_custom_call.1} parent=31 // pred_check_branch
            %271 = sbr.rel (%p269) target = $region36
          $region35: #{tpu_custom_call.1} parent=31 // pred_region
            // Predicated region
            $region37: #{tpu_custom_call.1} parent=35 // pred_check
              _
            $region38: #{tpu_custom_call.1} parent=35 // pred_check_branch
              %273 = sbr.rel (0) target = $region40
            $region39: #{tpu_custom_call.1} parent=35 // pred_region
              // Predicated region
              $region59: #{tpu_custom_call.1} parent=39 // pred_check
                _
              $region60: #{tpu_custom_call.1} parent=39 // pred_check_branch
                %332 = sbr.rel (0) target = $region62
              $region61: #{tpu_custom_call.1} parent=39 // pred_region
                %s333 = sdiv.u32.pop %s264, 5
                %s334 = srem.u32.pop %s264, 5
                // While loop
                $region63: #{tpu_custom_call.1} parent=61 // loop_pre_header
                  _
                $region64: #{tpu_custom_call.1} parent=61 // loop_header
                  %s336 = sphi 0, %s338
                  %p337 = scmp.ge.s32.totalorder %s336, %s333
                  %s341 = sphi 0, %s356
                  %s342 = sphi %s257, %s359
                  %s343 = sphi %s268, %s360
                $region65: #{tpu_custom_call.1} parent=61 // loop_header_branch
                  %340 = sbr.rel (%p337) target = $region69
                $region66: #{tpu_custom_call.1} parent=61 // loop_body
                  %v344 = vld [vmem:[%s342] sm:$0xff]
                  %345 = vst [vmem:[%s343] sm:$0xff] %v344
                  %v346 = vld [vmem:[%s342 + $0x8] sm:$0xff]
                  %347 = vst [vmem:[%s343 + $0x8] sm:$0xff] %v346
                  %v348 = vld [vmem:[%s342 + $0x10] sm:$0xff]
                  %349 = vst [vmem:[%s343 + $0x10] sm:$0xff] %v348
                  %v350 = vld [vmem:[%s342 + $0x18] sm:$0xff]
                  %351 = vst [vmem:[%s343 + $0x18] sm:$0xff] %v350
                  %v352 = vld [vmem:[%s342 + $0x20] sm:$0xff]
                  %353 = vst [vmem:[%s343 + $0x20] sm:$0xff] %v352
                  %s354 = sadd.s32 1, %s341
                  %p355 = scmp.ge.s32.totalorder %s354, %s333
                  %s356 = scalar_select %p355, 0, %s354
                  %s357 = smul.u32 %s356, 40
                  %s358 = smul.u32 %s356, 40
                  %s359 = scalar_lea.vmem %s257, %s357 [#allocation2]
                  %s360 = scalar_lea.vmem %s268, %s358
                $region67: #{tpu_custom_call.1} parent=61 // loop_footer
                  %s338 = sadd.s32 %s336, 1
                $region68: #{tpu_custom_call.1} parent=61 // loop_footer_branch
                  %335 = sbr.rel target = $region64
                $region69: #{tpu_custom_call.1} parent=61 // loop_exit
                  _
                %s361 = sdiv.u32.pop %s264, 5
                %s362 = srem.u32.pop %s264, 5
                %s363 = smul.u32 %s361, 5
                %s364 = smul.u32 8, %s363
                %s365 = scalar_lea.vmem %s257, %s364 [#allocation2]
                %s366 = smul.u32 8, %s363
                %s367 = scalar_lea.vmem %s268, %s366
                // While loop
                $region70: #{tpu_custom_call.1} parent=61 // loop_pre_header
                  _
                $region71: #{tpu_custom_call.1} parent=61 // loop_header
                  %s369 = sphi 0, %s371
                  %p370 = scmp.ge.s32.totalorder %s369, %s362
                  %s374 = sphi 0, %s381
                  %s375 = sphi %s365, %s384
                  %s376 = sphi %s367, %s385
                $region72: #{tpu_custom_call.1} parent=61 // loop_header_branch
                  %373 = sbr.rel (%p370) target = $region76
                $region73: #{tpu_custom_call.1} parent=61 // loop_body
                  %v377 = vld [vmem:[%s375] sm:$0xff]
                  %378 = vst [vmem:[%s376] sm:$0xff] %v377
                  %s379 = sadd.s32 1, %s374
                  %p380 = scmp.ge.s32.totalorder %s379, %s362
                  %s381 = scalar_select %p380, 0, %s379
                  %s382 = smul.u32 %s381, 8
                  %s383 = smul.u32 %s381, 8
                  %s384 = scalar_lea.vmem %s365, %s382 [#allocation2]
                  %s385 = scalar_lea.vmem %s367, %s383
                $region74: #{tpu_custom_call.1} parent=61 // loop_footer
                  %s371 = sadd.s32 %s369, 1
                $region75: #{tpu_custom_call.1} parent=61 // loop_footer_branch
                  %368 = sbr.rel target = $region71
                $region76: #{tpu_custom_call.1} parent=61 // loop_exit
                  _
              $region62: #{tpu_custom_call.1} parent=39 // pred_fallthru
                _
              // Predicated region
              $region77: #{tpu_custom_call.1} parent=39 // pred_check
                _
              $region78: #{tpu_custom_call.1} parent=39 // pred_check_branch
                %387 = sbr.rel target = $region80
              $region79: #{tpu_custom_call.1} parent=39 // pred_region
                _
              $region80: #{tpu_custom_call.1} parent=39 // pred_fallthru
                _
            $region40: #{tpu_custom_call.1} parent=35 // pred_fallthru
              _
            // Predicated region
            $region41: #{tpu_custom_call.1} parent=35 // pred_check
              _
            $region42: #{tpu_custom_call.1} parent=35 // pred_check_branch
              %275 = sbr.rel target = $region44
            $region43: #{tpu_custom_call.1} parent=35 // pred_region
              %s277 = ssub.s32 256, 1
              %s278 = sdiv.u32.pop %s264, 5
              %s279 = srem.u32.pop %s264, 5
              // While loop
              $region45: #{tpu_custom_call.1} parent=43 // loop_pre_header
                _
              $region46: #{tpu_custom_call.1} parent=43 // loop_header
                %s281 = sphi 0, %s283
                %p282 = scmp.ge.s32.totalorder %s281, %s278
                %s286 = sphi 0, %s301
                %s287 = sphi %s257, %s304
                %s288 = sphi %s268, %s305
              $region47: #{tpu_custom_call.1} parent=43 // loop_header_branch
                %285 = sbr.rel (%p282) target = $region51
              $region48: #{tpu_custom_call.1} parent=43 // loop_body
                %v289 = vld [vmem:[%s287] sm:%s277]
                %290 = vst [vmem:[%s288] sm:%s277] %v289
                %v291 = vld [vmem:[%s287 + $0x8] sm:%s277]
                %292 = vst [vmem:[%s288 + $0x8] sm:%s277] %v291
                %v293 = vld [vmem:[%s287 + $0x10] sm:%s277]
                %294 = vst [vmem:[%s288 + $0x10] sm:%s277] %v293
                %v295 = vld [vmem:[%s287 + $0x18] sm:%s277]
                %296 = vst [vmem:[%s288 + $0x18] sm:%s277] %v295
                %v297 = vld [vmem:[%s287 + $0x20] sm:%s277]
                %298 = vst [vmem:[%s288 + $0x20] sm:%s277] %v297
                %s299 = sadd.s32 1, %s286
                %p300 = scmp.ge.s32.totalorder %s299, %s278
                %s301 = scalar_select %p300, 0, %s299
                %s302 = smul.u32 %s301, 40
                %s303 = smul.u32 %s301, 40
                %s304 = scalar_lea.vmem %s257, %s302 [#allocation2]
                %s305 = scalar_lea.vmem %s268, %s303
              $region49: #{tpu_custom_call.1} parent=43 // loop_footer
                %s283 = sadd.s32 %s281, 1
              $region50: #{tpu_custom_call.1} parent=43 // loop_footer_branch
                %280 = sbr.rel target = $region46
              $region51: #{tpu_custom_call.1} parent=43 // loop_exit
                _
              %s306 = sdiv.u32.pop %s264, 5
              %s307 = srem.u32.pop %s264, 5
              %s308 = smul.u32 %s306, 5
              %s309 = smul.u32 8, %s308
              %s310 = scalar_lea.vmem %s257, %s309 [#allocation2]
              %s311 = smul.u32 8, %s308
              %s312 = scalar_lea.vmem %s268, %s311
              // While loop
              $region52: #{tpu_custom_call.1} parent=43 // loop_pre_header
                _
              $region53: #{tpu_custom_call.1} parent=43 // loop_header
                %s314 = sphi 0, %s316
                %p315 = scmp.ge.s32.totalorder %s314, %s307
                %s319 = sphi 0, %s326
                %s320 = sphi %s310, %s329
                %s321 = sphi %s312, %s330
              $region54: #{tpu_custom_call.1} parent=43 // loop_header_branch
                %318 = sbr.rel (%p315) target = $region58
              $region55: #{tpu_custom_call.1} parent=43 // loop_body
                %v322 = vld [vmem:[%s320] sm:%s277]
                %323 = vst [vmem:[%s321] sm:%s277] %v322
                %s324 = sadd.s32 1, %s319
                %p325 = scmp.ge.s32.totalorder %s324, %s307
                %s326 = scalar_select %p325, 0, %s324
                %s327 = smul.u32 %s326, 8
                %s328 = smul.u32 %s326, 8
                %s329 = scalar_lea.vmem %s310, %s327 [#allocation2]
                %s330 = scalar_lea.vmem %s312, %s328
              $region56: #{tpu_custom_call.1} parent=43 // loop_footer
                %s316 = sadd.s32 %s314, 1
              $region57: #{tpu_custom_call.1} parent=43 // loop_footer_branch
                %313 = sbr.rel target = $region53
              $region58: #{tpu_custom_call.1} parent=43 // loop_exit
                _
            $region44: #{tpu_custom_call.1} parent=35 // pred_fallthru
              _
          $region36: #{tpu_custom_call.1} parent=31 // pred_fallthru
            _
          %388 = vnop
        $region32: #{tpu_custom_call.1} parent=27 // pred_fallthru
          _
      $region28: #{tpu_custom_call.1} parent=5 // pred_fallthru
        _
      %p389 = scmp.le.s32.totalorder 2, %s8
      // Predicated region
      $region81: #{tpu_custom_call.1} parent=5 // pred_check
        %p390 = pneg %p389
      $region82: #{tpu_custom_call.1} parent=5 // pred_check_branch
        %392 = sbr.rel (%p390) target = $region84
      $region83: #{tpu_custom_call.1} parent=5 // pred_region
        %s393 = ssub.s32 %s8, 2
        // Predicated region
        $region85: #{tpu_custom_call.1} parent=83 // pred_check
          %p394 = pneg %p84
        $region86: #{tpu_custom_call.1} parent=83 // pred_check_branch
          %396 = sbr.rel (%p394) target = $region88
        $region87: #{tpu_custom_call.1} parent=83 // pred_region
          %s397 = sand.u32 %s69, 1
          %s398 = sand.u32 %s69, 1
          %s399 = smul.addr %s398, 40
          %s400 = scalar_lea.vmem [#allocation2], %s399
        $region88: #{tpu_custom_call.1} parent=83 // pred_fallthru
          _
      $region84: #{tpu_custom_call.1} parent=5 // pred_fallthru
        _
    $region6: #{tpu_custom_call.1} parent=1 // loop_footer
      %s12 = sadd.s32 1, %s8
    $region7: #{tpu_custom_call.1} parent=1 // loop_footer_branch
      %7 = sbr.rel target = $region3
    $region8: #{tpu_custom_call.1} parent=1 // loop_exit
      _

</llo_original>
